<compile_context>
chip_gen: v7x
topology: tpu7x:2x2x1
jax: 0.10.0
libtpu: 0.0.40
codegen_flags: <defaults>
</compile_context>

<pallas_src>
import jax
import jax.numpy as jnp
from jax import lax
from jax.experimental import pallas as pl
from jax.experimental.pallas import tpu as pltpu


def _make_kernel(n_rows, tile_rows, mask_rows, use_weight):
    """Build a kernel specialized on (static) row count / masking / weighting."""

    def _compute(pred_ref, gt_ref, w_ref, out_ref):
        p = pred_ref[...].astype(jnp.float32)
        g = gt_ref[...].astype(jnp.float32)
        d = p - g
        if use_weight:
            d = d * w_ref[...].astype(jnp.float32)   # (tile_rows,1) bcast over lanes
        d2 = d * d
        if mask_rows:
            # Ragged last tile: zero contributions from rows >= n_rows.  Mask the
            # *result* so unspecified OOB input data (possibly NaN/Inf) is inert.
            row = (pl.program_id(0) * tile_rows
                   + lax.broadcasted_iota(jnp.int32, (tile_rows, 1), 0))
            d2 = jnp.where(row < n_rows, d2, 0.0)
        hw = d2.shape[-1]
        # Fold sublane groups with plain VPU adds -> lane-dense (8, HW) partial.
        part = jnp.sum(d2.reshape(tile_rows // 8, 8, hw), axis=0)
        out_ref[...] = part.reshape(1, 8, hw)

    if use_weight:
        def kernel(pred_ref, gt_ref, w_ref, out_ref):
            _compute(pred_ref, gt_ref, w_ref, out_ref)
    else:
        def kernel(pred_ref, gt_ref, out_ref):
            _compute(pred_ref, gt_ref, None, out_ref)
    return kernel


def _vmem_limit_bytes():
    """Per-generation scoped-VMEM limit with headroom (v7x: 64 MiB physical)."""
    cap = 64 * 1024 * 1024
    try:
        cap = int(pltpu.get_tpu_info().vmem_capacity_bytes)
    except Exception:  # conservative fallback if the query is unavailable
        pass
    return min(cap * 3 // 4, 64 * 1024 * 1024)   # v7x: 48 MiB; v5e/v6e: 64 MiB


def _choose_tile_rows(n_rows, hw, dtype, vmem_limit):
    """Largest packed-sublane-aligned row tile fitting the pipeline budget."""
    itemsize = jnp.dtype(dtype).itemsize
    sub = max(8, 32 // max(1, itemsize))          # 8 f32 / 16 bf16 / 32 8-bit
    n_sub = ((n_rows + sub - 1) // sub) * sub

    budget = vmem_limit // 2                      # 2 inputs x 2 pipeline buffers
    per_row = 4 * hw * itemsize                   # one row across those 4 buffers
    max_rows = max(sub, (budget // per_row) // sub * sub)
    max_rows = min(max_rows, 4096)                # bound unroll / intermediates

    tile = min(max_rows, n_sub)
    num_tiles = -(-n_rows // tile)
    # v7x megacore: make sure both TensorCores get a grid step when possible.
    if num_tiles == 1 and n_sub > sub:
        tile = max(sub, ((n_sub // 2 + sub - 1) // sub) * sub)
    return tile


def joints_mse_loss(output, target, target_weight, use_target_weight=True):
    """output, target: (B, J, H, W); target_weight: (B, J, 1). Returns scalar f32."""
    B, J, H, W = output.shape
    HW = H * W
    N = B * J

    # Layout-preserving (free) flattening; row r <-> (b = r // J, j = r % J).
    pred = output.reshape(N, HW)
    gt = target.reshape(N, HW)

    vmem_limit = _vmem_limit_bytes()
    tile_rows = _choose_tile_rows(N, HW, output.dtype, vmem_limit)
    num_tiles = -(-N // tile_rows)
    mask_rows = (N % tile_rows) != 0              # ragged last tile -> mask in-kernel

    kernel = _make_kernel(N, tile_rows, mask_rows, use_target_weight)

    if use_target_weight:
        w = target_weight.reshape(N, 1)
        in_specs = [
            pl.BlockSpec((tile_rows, HW), lambda i: (i, 0)),
            pl.BlockSpec((tile_rows, HW), lambda i: (i, 0)),
            pl.BlockSpec((tile_rows, 1), lambda i: (i, 0)),
        ]
        args = (pred, gt, w)
    else:
        in_specs = [
            pl.BlockSpec((tile_rows, HW), lambda i: (i, 0)),
            pl.BlockSpec((tile_rows, HW), lambda i: (i, 0)),
        ]
        args = (pred, gt)

    partials = pl.pallas_call(
        kernel,
        out_shape=jax.ShapeDtypeStruct((num_tiles, 8, HW), jnp.float32),
        grid_spec=pltpu.PrefetchScalarGridSpec(
            num_scalar_prefetch=0,
            grid=(num_tiles,),
            in_specs=in_specs,
            out_specs=pl.BlockSpec((1, 8, HW), lambda i: (i, 0, 0)),
        ),
        compiler_params=pltpu.CompilerParams(
            dimension_semantics=("parallel",),    # megacore-shardable (v7x)
            vmem_limit_bytes=vmem_limit,
        ),
    )(*args)

    # Tiny final fold (num_tiles*8*HW values) + scaling outside the kernel.
    scale = 0.5 / float(B * HW * J)
    return jnp.sum(partials) * jnp.float32(scale)


def _reference_loss(output, target, target_weight, use_target_weight=True):
    B, J = output.shape[0], output.shape[1]
    pred = output.reshape(B, J, -1).astype(jnp.float32)
    gt = target.reshape(B, J, -1).astype(jnp.float32)
    if use_target_weight:
        w = target_weight.reshape(B, J, 1).astype(jnp.float32)
        pred = pred * w
        gt = gt * w
    per_joint_mse = jnp.mean((pred - gt) ** 2, axis=(0, 2))   # mean over B*HW
    return jnp.sum(0.5 * per_joint_mse) / J


if __name__ == "__main__":
    key = jax.random.PRNGKey(0)
    k1, k2, k3 = jax.random.split(key, 3)

    B, J, H, W = 2, 4, 16, 16
    output = jax.random.normal(k1, (B, J, H, W), dtype=jnp.float32)
    target = jax.random.normal(k2, (B, J, H, W), dtype=jnp.float32)
    target_weight = jax.random.uniform(k3, (B, J, 1), dtype=jnp.float32)

    # Weighted path.
    loss = joints_mse_loss(output, target, target_weight, use_target_weight=True)
    jax.block_until_ready(loss)
    ref = _reference_loss(output, target, target_weight, True)
    assert jnp.allclose(loss, ref, rtol=1e-5, atol=1e-6), (loss, ref)

    # Unweighted path (specialized kernel, no weight stream).
    loss_nw = joints_mse_loss(output, target, target_weight, use_target_weight=False)
    jax.block_until_ready(loss_nw)
    ref_nw = _reference_loss(output, target, target_weight, False)
    assert jnp.allclose(loss_nw, ref_nw, rtol=1e-5, atol=1e-6), (loss_nw, ref_nw)

    # Ragged row count (B*J=9) exercises the cdiv grid + in-kernel row mask.
    B2, J2 = 3, 3
    o2 = jax.random.normal(k1, (B2, J2, H, W), dtype=jnp.float32)
    t2 = jax.random.normal(k2, (B2, J2, H, W), dtype=jnp.float32)
    w2 = jax.random.uniform(k3, (B2, J2, 1), dtype=jnp.float32)
    loss2 = joints_mse_loss(o2, t2, w2, use_target_weight=True)
    jax.block_until_ready(loss2)
    ref2 = _reference_loss(o2, t2, w2, True)
    assert jnp.allclose(loss2, ref2, rtol=1e-5, atol=1e-6), (loss2, ref2)

    # bf16 inputs with COCO-like 17 joints: packed-sublane (16-row) tiling + mask.
    B3, J3 = 2, 17
    o3 = jax.random.normal(k1, (B3, J3, H, W), dtype=jnp.bfloat16)
    t3 = jax.random.normal(k2, (B3, J3, H, W), dtype=jnp.bfloat16)
    w3 = jax.random.uniform(k3, (B3, J3, 1), dtype=jnp.float32)
    loss3 = joints_mse_loss(o3, t3, w3, use_target_weight=True)
    jax.block_until_ready(loss3)
    ref3 = _reference_loss(o3, t3, w3, True)
    assert jnp.allclose(loss3, ref3, rtol=1e-2, atol=1e-3), (loss3, ref3)

    print("KERNEL_OK")
</pallas_src>

<mosaic_0001>
module attributes {stable_mosaic.version = 11 : i64} {
  func.func @kernel(%arg0: i32, %arg1: memref<8x256xf32, #tpu.memory_space<vmem>>, %arg2: memref<8x256xf32, #tpu.memory_space<vmem>>, %arg3: memref<8x1xf32, #tpu.memory_space<vmem>>, %arg4: memref<1x8x256xf32, #tpu.memory_space<vmem>>) attributes {dimension_semantics = [#tpu.dimension_semantics<parallel>], iteration_bounds = array<i64: 1>, scalar_prefetch = 0 : i64, scratch_operands = 0 : i64, tpu.core_type = #tpu.core_type<tc>, window_params = [{transform_indices = @transform_0, window_bounds = array<i64: 8, 256>}, {transform_indices = @transform_1, window_bounds = array<i64: 8, 256>}, {transform_indices = @transform_2, window_bounds = array<i64: 8, 1>}, {transform_indices = @transform_3, window_bounds = array<i64: 1, 8, 256>}]} {
    %c0 = arith.constant 0 : index
    %c0_0 = arith.constant 0 : index
    %0 = vector.load %arg1[%c0, %c0_0] : memref<8x256xf32, #tpu.memory_space<vmem>>, vector<8x256xf32>
    %c0_1 = arith.constant 0 : index
    %c0_2 = arith.constant 0 : index
    %1 = vector.load %arg2[%c0_1, %c0_2] : memref<8x256xf32, #tpu.memory_space<vmem>>, vector<8x256xf32>
    %2 = arith.subf %0, %1 : vector<8x256xf32>
    %c0_3 = arith.constant 0 : index
    %c0_4 = arith.constant 0 : index
    %3 = vector.load %arg3[%c0_3, %c0_4] : memref<8x1xf32, #tpu.memory_space<vmem>>, vector<8x1xf32>
    %4 = vector.broadcast %3 : vector<8x1xf32> to vector<8x256xf32>
    %5 = arith.mulf %2, %4 : vector<8x256xf32>
    %6 = arith.mulf %5, %5 : vector<8x256xf32>
    %7 = vector.shape_cast %6 : vector<8x256xf32> to vector<1x8x256xf32>
    %cst = arith.constant dense<0.000000e+00> : vector<8x256xf32>
    %8 = vector.multi_reduction <add>, %7, %cst [0] : vector<1x8x256xf32> to vector<8x256xf32>
    %9 = vector.shape_cast %8 : vector<8x256xf32> to vector<1x8x256xf32>
    %c0_5 = arith.constant 0 : index
    %c0_6 = arith.constant 0 : index
    %c0_7 = arith.constant 0 : index
    %10 = vector.load %arg4[%c0_5, %c0_6, %c0_7] : memref<1x8x256xf32, #tpu.memory_space<vmem>>, vector<1x8x256xf32>
    tpu.vector_store %arg4[%c0_5, %c0_6, %c0_7], %9 {strides = array<i32>} : memref<1x8x256xf32, #tpu.memory_space<vmem>>, vector<1x8x256xf32>,
    return
  }
  func.func @transform_0(%arg0: i32) -> (i32, i32) {
    %c0_i32 = arith.constant 0 : i32
    %c0_i32_0 = arith.constant 0 : i32
    return %arg0, %c0_i32 : i32, i32
  }
  func.func @transform_1(%arg0: i32) -> (i32, i32) {
    %c0_i32 = arith.constant 0 : i32
    %c0_i32_0 = arith.constant 0 : i32
    return %arg0, %c0_i32 : i32, i32
  }
  func.func @transform_2(%arg0: i32) -> (i32, i32) {
    %c0_i32 = arith.constant 0 : i32
    %c0_i32_0 = arith.constant 0 : i32
    return %arg0, %c0_i32 : i32, i32
  }
  func.func @transform_3(%arg0: i32) -> (i32, i32, i32) {
    %c0_i32 = arith.constant 0 : i32
    %c0_i32_0 = arith.constant 0 : i32
    %c0_i32_1 = arith.constant 0 : i32
    return %arg0, %c0_i32, %c0_i32_0 : i32, i32, i32
  }
}

</mosaic_0001>

<llo_original>
// kernel: tpu_custom_call.1
$region0: #{tpu_custom_call.1}
  #allocation0 [shape = 'u32[]', space=smem, size = 0x4, offset = 0x4, fixed_abs, tag = 'smem constant byte address 0x4 - core index']
  #allocation1 [shape = 'u32[144,128]{1,0:T(1,128)}', space=vmem, size = 0x12000, scoped, tag = 'internal scratch']
  %s0 = inlined_call_operand.hbm [shape: f32[8,256], index: 0, kind: input, shape index: {}]
  %s1 = inlined_call_operand.hbm [shape: f32[8,256], index: 1, kind: input, shape index: {}]
  %s2 = inlined_call_operand.vmem [shape: f32[8,1], index: 2, kind: input, shape index: {}]
  %s3 = inlined_call_operand.hbm [shape: f32[1,8,256], index: 3, kind: output, shape index: {}]
  %s4 = sld [smem:[#allocation0]]
  $region30: #{tpu_custom_call.1} parent=0
    _
  %s6 = ssub.s32 1, %s4
  %s7 = scalar_select 0, %s6, %s4
  $region1: #{tpu_custom_call.1} parent=0
    #allocation2 [shape = 'u8[8192]{0}', space=vmem, size = 0x2000, scoped, tag = 'input window, operand 0, single buffered']
    #allocation3 [shape = 's32[1]{0}', space=sflag, size = 0x4, scoped, tag = 'scoped memory for tpu_custom_call.1']
    #allocation4 [shape = 's32[1]{0}', space=sflag, size = 0x4, scoped, tag = 'scoped memory for tpu_custom_call.1']
    #allocation5 [shape = 'u8[8192]{0}', space=vmem, size = 0x2000, scoped, tag = 'input window, operand 1, single buffered']
    #allocation6 [shape = 's32[1]{0}', space=sflag, size = 0x4, scoped, tag = 'scoped memory for tpu_custom_call.1']
    #allocation7 [shape = 'u8[8192]{0}', space=vmem, size = 0x2000, scoped, tag = 'output window, operand 0, single buffered']
    %8 = vsyncpa [#allocation3], 0
    %9 = vsyncpa [#allocation6], 0
    %10 = vsyncpa [#allocation4], 0
    // Predicated region
    $region2: #{tpu_custom_call.1} parent=1 // pred_check
      _
    $region3: #{tpu_custom_call.1} parent=1 // pred_check_branch
      %12 = sbr.rel (0) target = $region5
    $region4: #{tpu_custom_call.1} parent=1 // pred_region
      %s14 = ssub.s32 256, 256
      %15 = vsyncadd [#allocation3], %s14
      %s17 = sshll.u32 [#allocation2], 4
      %s18 = int_to_ptr.vmem [resolvable:$true] %s17
      %20 = dma.hbm_to_vmem [thread:$0]  %s0, 256, %s18, [#allocation3]
    $region5: #{tpu_custom_call.1} parent=1 // pred_fallthru
      _
    // Predicated region
    $region6: #{tpu_custom_call.1} parent=1 // pred_check
      _
    $region7: #{tpu_custom_call.1} parent=1 // pred_check_branch
      %22 = sbr.rel (0) target = $region9
    $region8: #{tpu_custom_call.1} parent=1 // pred_region
      %s24 = ssub.s32 256, 256
      %25 = vsyncadd [#allocation6], %s24
      %s27 = sshll.u32 [#allocation5], 4
      %s28 = int_to_ptr.vmem [resolvable:$true] %s27
      %30 = dma.hbm_to_vmem [thread:$0]  %s1, 256, %s28, [#allocation6]
    $region9: #{tpu_custom_call.1} parent=1 // pred_fallthru
      _
    // Predicated region
    $region10: #{tpu_custom_call.1} parent=1 // pred_check
      _
    $region11: #{tpu_custom_call.1} parent=1 // pred_check_branch
      %32 = sbr.rel (0) target = $region13
    $region12: #{tpu_custom_call.1} parent=1 // pred_region
      _
    $region13: #{tpu_custom_call.1} parent=1 // pred_fallthru
      _
    // Predicated region
    $region14: #{tpu_custom_call.1} parent=1 // pred_check
      _
    $region15: #{tpu_custom_call.1} parent=1 // pred_check_branch
      %34 = sbr.rel (0) target = $region17
    $region16: #{tpu_custom_call.1} parent=1 // pred_region
      %35 = dma.done [#allocation3], 256
    $region17: #{tpu_custom_call.1} parent=1 // pred_fallthru
      _
    // Predicated region
    $region18: #{tpu_custom_call.1} parent=1 // pred_check
      _
    $region19: #{tpu_custom_call.1} parent=1 // pred_check_branch
      %37 = sbr.rel (0) target = $region21
    $region20: #{tpu_custom_call.1} parent=1 // pred_region
      %38 = dma.done [#allocation6], 256
    $region21: #{tpu_custom_call.1} parent=1 // pred_fallthru
      _
    %v39 = vld [vmem:[#allocation2] sm:$0xff]
    %v40 = vld [vmem:[#allocation2 + $0x8] sm:$0xff]
    %v41 = vld [vmem:[#allocation5] sm:$0xff]
    %v42 = vld [vmem:[#allocation5 + $0x8] sm:$0xff]
    %v43 = vsub.f32 %v39, %v41
    %v44 = vsub.f32 %v40, %v42
    %v45 = vld [vmem:[%s2] sm:$0xff]
    %47 = vset.pattern.permute.xlu0 0
    %48 = vperm.xlu0 %47, %v45
    %v49 = vpop.permute.xlu0 %48
    %v51 = vmul.f32 %v43, %v49
    %v52 = vmul.f32 %v44, %v49
    %v53 = vmul.f32 %v51, %v51
    %v54 = vmul.f32 %v52, %v52
    %v55 = vadd.f32 %v53, 0.0
    %v56 = vadd.f32 %v54, 0.0
    %57 = vst [vmem:[#allocation7] sm:$0xff] %v55
    %58 = vst [vmem:[#allocation7 + $0x8] sm:$0xff] %v56
    // Predicated region
    $region22: #{tpu_custom_call.1} parent=1 // pred_check
      _
    $region23: #{tpu_custom_call.1} parent=1 // pred_check_branch
      %60 = sbr.rel (0) target = $region25
    $region24: #{tpu_custom_call.1} parent=1 // pred_region
      %s62 = ssub.s32 256, 256
      %63 = vsyncadd [#allocation4], %s62
      %s65 = sshll.u32 [#allocation7], 4
      %s66 = int_to_ptr.vmem [resolvable:$true] %s65
      %68 = dma.vmem_to_hbm [thread:$0]  %s66, 256, %s3, [#allocation4]
    $region25: #{tpu_custom_call.1} parent=1 // pred_fallthru
      _
    // Predicated region
    $region26: #{tpu_custom_call.1} parent=1 // pred_check
      _
    $region27: #{tpu_custom_call.1} parent=1 // pred_check_branch
      %70 = sbr.rel (0) target = $region29
    $region28: #{tpu_custom_call.1} parent=1 // pred_region
      %71 = dma.done [#allocation4], 256
    $region29: #{tpu_custom_call.1} parent=1 // pred_fallthru
      _
    %72 = vsyncpa [#allocation3], 1
    %73 = vsyncpa [#allocation6], 1
    %74 = vsyncpa [#allocation4], 1

</llo_original>
